<compile_context>
chip_gen: v5e
topology: v5e:2x2
jax: 0.10.0
libtpu: 0.0.40
codegen_flags: <defaults>
</compile_context>

<pallas_src>
import functools
import math

import jax
import jax.numpy as jnp
from jax.experimental import pallas as pl
from jax.experimental.pallas import tpu as pltpu

_LANE = 128
_SUBLANE = 8


def _round_up(v: int, m: int) -> int:
    return ((v + m - 1) // m) * m


def _round_down(v: int, m: int) -> int:
    return (v // m) * m


@functools.lru_cache(maxsize=1)
def _chip_traits():
    """Generation-aware tiling/VMEM parameters (safe fallbacks if query fails)."""
    kind = ""
    try:
        kind = jax.devices()[0].device_kind.lower()
    except Exception:
        pass
    try:
        vmem_cap = int(pltpu.get_tpu_info().vmem_capacity_bytes)
    except Exception:
        vmem_cap = 64 * 1024 * 1024          # v7x per-TC capacity = safe lower bound
    if "7" in kind:                          # v7x: 2 TCs, 64 MiB VMEM, 256x256 MXU
        tile_round, num_cores = 256, 2
    elif "v6" in kind:                       # v6e: 1 TC, 256x256 MXU
        tile_round, num_cores = 256, 1
    elif "v5 lite" in kind or "v5e" in kind or "v5lite" in kind:
        tile_round, num_cores = 128, 1       # v5e: 1 TC, 128x128 MXU
    elif "v4" in kind or "v5" in kind:       # v4 / v5p megacore: 2 TCs
        tile_round, num_cores = 128, 2
    else:
        tile_round, num_cores = 128, 1
    # Explicit scoped-VMEM limit (raised above the 16/32 MiB defaults), minus headroom
    # for Mosaic internal scratch.
    vmem_limit = min(vmem_cap * 3 // 4, 100 * 1024 * 1024)
    budget = vmem_limit - 2 * 1024 * 1024
    return {"tile_round": tile_round, "num_cores": num_cores,
            "vmem_limit": vmem_limit, "budget": budget}


@functools.lru_cache(maxsize=1)
def _single_buffer_supported():
    """Probe whether pipeline_mode=pl.Buffered(1) (single-buffered grid-invariant
    blocks) compiles and runs on this jax/libtpu; otherwise fall back to the default
    double-buffering (correct, just uses 2x param VMEM)."""
    try:
        const_spec = pl.BlockSpec((_SUBLANE, _LANE), lambda i: (0, 0),
                                  pipeline_mode=pl.Buffered(1))

        def k(c_ref, x_ref, o_ref):
            o_ref[...] = x_ref[...] + c_ref[...]

        f = pl.pallas_call(
            k,
            out_shape=jax.ShapeDtypeStruct((_SUBLANE, _LANE), jnp.float32),
            grid=(2,),
            in_specs=[const_spec, pl.BlockSpec((_SUBLANE, _LANE), lambda i: (0, 0))],
            out_specs=pl.BlockSpec((_SUBLANE, _LANE), lambda i: (0, 0)),
        )
        z = jnp.zeros((_SUBLANE, _LANE), jnp.float32)
        jax.block_until_ready(f(z, z))
        return True
    except Exception:
        return False


def _make_mlp_kernel(n_layers: int, last_activation: bool, compute_dtype):
    """Kernel args: x_ref, w0_ref, b0_ref, ..., w{L-1}_ref, b{L-1}_ref, o_ref."""

    def kernel(x_ref, *refs):
        o_ref = refs[-1]
        p_refs = refs[:-1]
        # In-kernel cast: x arrives in its native dtype; the VPU cast on the VMEM tile
        # is hidden under the DMA (no separate XLA cast pass over HBM).
        h = x_ref[...].astype(compute_dtype)
        for li in range(n_layers):
            w = p_refs[2 * li][...]
            b = p_refs[2 * li + 1][...]                     # f32 (1, dout_p)
            # MXU matmul with f32 accumulation; bias + ReLU epilogue stays in f32
            # (v5e has no bf16 VPU), one downcast per layer.
            acc = jnp.dot(h, w, preferred_element_type=jnp.float32) + b
            if li < n_layers - 1 or last_activation:
                acc = jnp.maximum(acc, 0.0)
            h = acc.astype(compute_dtype) if li < n_layers - 1 else acc
        o_ref[...] = h.astype(o_ref.dtype)

    return kernel


def _run_group(x2, ws, bs, *, apply_last_act, out_dtype, compute_dtype,
               traits, single_buffer, max_batch_tile):
    """One fused pallas_call over a group of layers whose params fit VMEM."""
    n, h_in = int(x2.shape[0]), int(x2.shape[1])
    h_out_p = int(ws[-1].shape[1])
    x_isz = jnp.dtype(x2.dtype).itemsize
    c_isz = jnp.dtype(compute_dtype).itemsize
    o_isz = jnp.dtype(out_dtype).itemsize
    param_bytes = sum(int(a.size) * a.dtype.itemsize for a in (*ws, *bs))
    param_vmem = param_bytes if single_buffer else 2 * param_bytes

    # Row alignment: 8 rows for f32 refs, 16 for bf16, 32 for int8 (sublane packing).
    row_align = max(_SUBLANE, 32 // min(x_isz, o_isz))

    # Per-row VMEM: double-buffered in/out tiles + widest live (input, f32 acc) pair.
    widths = [h_in] + [int(w.shape[1]) for w in ws]
    per_row = 2 * (h_in * x_isz + h_out_p * o_isz)
    per_row += max(c_isz * din + 4 * dout for din, dout in zip(widths[:-1], widths[1:]))

    avail = max(traits["budget"] - param_vmem, row_align * per_row)
    tb_cap = min(max_batch_tile, max(row_align, avail // per_row))
    if tb_cap >= traits["tile_round"]:
        tb_cap = _round_down(tb_cap, traits["tile_round"])   # lane/MXU-friendly tiles
    else:
        tb_cap = max(row_align, _round_down(tb_cap, row_align))

    num_cores = traits["num_cores"]
    if n <= row_align or (n <= tb_cap and num_cores == 1):
        tb = n                                   # single full-extent block, grid=(1,)
    else:
        # On multi-TC chips always emit >= num_cores tiles so "parallel" can shard.
        target_tiles = max(num_cores, pl.cdiv(n, tb_cap))
        tb = _round_up(pl.cdiv(n, target_tiles), traits["tile_round"])
        if pl.cdiv(n, tb) < target_tiles:
            tb = _round_up(pl.cdiv(n, target_tiles), row_align)
        tb = max(row_align, min(tb, tb_cap, _round_up(n, row_align)))
    grid = pl.cdiv(n, tb)
    # NOTE: the last block may extend past n.  Its extra rows read undefined data and
    # are masked on store; rows are independent so valid rows are unaffected.

    def _const_spec(shape):
        # Grid-invariant parameter blocks: single-buffer them (no extra DMA, half VMEM).
        if single_buffer:
            return pl.BlockSpec(shape, lambda i: (0, 0), pipeline_mode=pl.Buffered(1))
        return pl.BlockSpec(shape, lambda i: (0, 0))

    in_specs = [pl.BlockSpec((tb, h_in), lambda i: (i, 0))]
    flat_params = []
    for w, b in zip(ws, bs):
        in_specs.append(_const_spec(w.shape))
        in_specs.append(_const_spec(b.shape))
        flat_params += [w, b]

    flops = 2 * n * sum(int(w.shape[0]) * int(w.shape[1]) for w in ws)
    bytes_accessed = int(x2.size) * x_isz + n * h_out_p * o_isz + param_bytes

    return pl.pallas_call(
        _make_mlp_kernel(len(ws), apply_last_act, compute_dtype),
        out_shape=jax.ShapeDtypeStruct((n, h_out_p), out_dtype),
        grid=(grid,),
        in_specs=in_specs,
        out_specs=pl.BlockSpec((tb, h_out_p), lambda i: (i, 0)),
        compiler_params=pltpu.CompilerParams(
            dimension_semantics=("parallel",),
            vmem_limit_bytes=traits["vmem_limit"]),
        cost_estimate=pl.CostEstimate(
            flops=flops, transcendentals=0, bytes_accessed=bytes_accessed),
    )(x2, *flat_params)


def build_mlp_forward(weights, biases, *, last_activation=True, compute_dtype=None,
                      out_dtype=None, max_batch_tile=1024, return_padded=False):
    """Pad parameters ONCE (lane-dense, 128-wide columns), group layers to fit VMEM,
    and return a jitted forward(x) equivalent to MLPLayers(layers, dropout, 'relu',
    last_activation=...) in eval mode.

    weights[i]: (H_in_i, H_out_i)  (PyTorch Linear weight, transposed)
    biases[i]:  (H_out_i,)
    """
    n_layers = len(weights)
    h_in = int(weights[0].shape[0])
    h_out = int(weights[-1].shape[1])
    w_dtype = weights[0].dtype
    if compute_dtype is None:
        compute_dtype = w_dtype
    if out_dtype is None:
        out_dtype = w_dtype

    traits = _chip_traits()
    single_buffer = _single_buffer_supported()

    # Zero-pad every layer's output width up to a multiple of 128 so each MXU pass and
    # store is lane-dense.  Padding is exact: zero weight cols/rows + zero bias + ReLU
    # keep padded lanes at exactly 0, so results match after the final column slice.
    padded_w, padded_b = [], []
    prev_p = h_in
    for w, b in zip(weights, biases):
        din, dout = int(w.shape[0]), int(w.shape[1])
        dout_p = _round_up(dout, _LANE)
        wp = jnp.zeros((prev_p, dout_p), compute_dtype).at[:din, :dout].set(
            jnp.asarray(w, compute_dtype))
        bp = jnp.zeros((1, dout_p), jnp.float32).at[:, :dout].set(
            jnp.asarray(b, jnp.float32).reshape(1, dout))
        padded_w.append(wp)
        padded_b.append(bp)
        prev_p = dout_p
    h_out_p = prev_p

    # Greedy layer grouping: each group's parameter VMEM (+1 MiB headroom) must fit the
    # budget; oversize MLPs become a chain of pallas_calls with the padded intermediate
    # activation bounced through HBM (graceful degradation instead of a VMEM failure).
    mult = 1 if single_buffer else 2
    groups, cur, cur_bytes = [], [], 0
    for li in range(n_layers):
        lb = mult * (int(padded_w[li].size) * padded_w[li].dtype.itemsize
                     + int(padded_b[li].size) * padded_b[li].dtype.itemsize)
        if cur and cur_bytes + lb > traits["budget"] - (1 << 20):
            groups.append(cur)
            cur, cur_bytes = [], 0
        cur.append(li)
        cur_bytes += lb
    groups.append(cur)
    # TODO(synk): if a single layer's padded params alone exceed the VMEM budget
    # (possible on v7x's 64 MiB for very wide layers), add a K-tiled accumulator path
    # (grid axis over the contraction dim, "arbitrary", pl.when init/finalize).

    def forward(x):
        orig_shape = x.shape
        h = x.reshape(-1, h_in)
        for gi, g in enumerate(groups):
            is_last = gi == len(groups) - 1
            h = _run_group(
                h,
                [padded_w[i] for i in g],
                [padded_b[i] for i in g],
                apply_last_act=(last_activation if is_last else True),
                out_dtype=(out_dtype if is_last else compute_dtype),
                compute_dtype=compute_dtype,
                traits=traits,
                single_buffer=single_buffer,
                max_batch_tile=max_batch_tile)
        if not return_padded and h_out_p != h_out:
            h = h[:, :h_out]     # padded-width consumers can pass return_padded=True
        return h.reshape(orig_shape[:-1] + (h.shape[-1],))

    return jax.jit(forward)


def init_mlp_params(layers, key):
    """Deterministic init mimicking nn.Linear default (uniform +-1/sqrt(fan_in))."""
    weights, biases = [], []
    for din, dout in zip(layers[:-1], layers[1:]):
        key, kw, kb = jax.random.split(key, 3)
        bound = 1.0 / math.sqrt(din)
        weights.append(jax.random.uniform(kw, (din, dout), jnp.float32, -bound, bound))
        biases.append(jax.random.uniform(kb, (dout,), jnp.float32, -bound, bound))
    return weights, biases


def mlp_reference(x, weights, biases, last_activation=True):
    h = x
    n = len(weights)
    for i, (w, b) in enumerate(zip(weights, biases)):
        h = h @ w + b
        if i < n - 1 or last_activation:
            h = jnp.maximum(h, 0.0)
    return h


if __name__ == "__main__":
    # MLPLayers([64, 32, 16], dropout=0.2, activation='relu') at eval time
    # (module docstring example: input (128, 64) -> output (128, 16)).
    layers = [64, 32, 16]
    batch = 128

    key = jax.random.PRNGKey(0)
    key, kx = jax.random.split(key)
    x = jax.random.normal(kx, (batch, layers[0]), jnp.float32)
    weights, biases = init_mlp_params(layers, key)

    # f32 path (matches PyTorch semantics exactly).
    fwd = build_mlp_forward(weights, biases, last_activation=True)
    out = jax.block_until_ready(fwd(x))
    ref = mlp_reference(x, weights, biases, last_activation=True)
    assert out.shape == (batch, layers[-1])
    assert jnp.allclose(out, ref, atol=1e-5, rtol=1e-5), "f32 mismatch vs reference"

    # bf16 fast path: bf16 operands on the MXU, f32 accumulation/epilogue, f32 output.
    fwd_bf16 = build_mlp_forward(weights, biases, last_activation=True,
                                 compute_dtype=jnp.bfloat16, out_dtype=jnp.float32)
    out_bf16 = jax.block_until_ready(fwd_bf16(x))
    assert out_bf16.shape == (batch, layers[-1])
    assert jnp.allclose(out_bf16, ref, atol=5e-2, rtol=5e-2), "bf16 mismatch vs reference"

    print("KERNEL_OK")
</pallas_src>

<mosaic_0001>
module attributes {stable_mosaic.version = 11 : i64} {
  func.func @k(%arg0: i32, %arg1: memref<8x128xf32, #tpu.memory_space<vmem>>, %arg2: memref<8x128xf32, #tpu.memory_space<vmem>>, %arg3: memref<8x128xf32, #tpu.memory_space<vmem>>) attributes {dimension_semantics = [#tpu.dimension_semantics<arbitrary>], iteration_bounds = array<i64: 2>, scalar_prefetch = 0 : i64, scratch_operands = 0 : i64, tpu.core_type = #tpu.core_type<tc>, window_params = [{pipeline_mode = #tpu.pipeline_mode<synchronous>, transform_indices = @transform_0, window_bounds = array<i64: 8, 128>}, {pipeline_mode = #tpu.pipeline_mode<synchronous>, transform_indices = @transform_1, window_bounds = array<i64: 8, 128>}, {pipeline_mode = #tpu.pipeline_mode<synchronous>, transform_indices = @transform_2, window_bounds = array<i64: 8, 128>}]} {
    %c0 = arith.constant 0 : index
    %c0_0 = arith.constant 0 : index
    %0 = vector.load %arg2[%c0, %c0_0] : memref<8x128xf32, #tpu.memory_space<vmem>>, vector<8x128xf32>
    %c0_1 = arith.constant 0 : index
    %c0_2 = arith.constant 0 : index
    %1 = vector.load %arg1[%c0_1, %c0_2] : memref<8x128xf32, #tpu.memory_space<vmem>>, vector<8x128xf32>
    %2 = arith.addf %0, %1 : vector<8x128xf32>
    %c0_3 = arith.constant 0 : index
    %c0_4 = arith.constant 0 : index
    %3 = vector.load %arg3[%c0_3, %c0_4] : memref<8x128xf32, #tpu.memory_space<vmem>>, vector<8x128xf32>
    tpu.vector_store %arg3[%c0_3, %c0_4], %2 {strides = array<i32>} : memref<8x128xf32, #tpu.memory_space<vmem>>, vector<8x128xf32>,
    return
  }
  func.func @transform_0(%arg0: i32) -> (i32, i32) {
    %c0_i32 = arith.constant 0 : i32
    %c0_i32_0 = arith.constant 0 : i32
    %c0_i32_1 = arith.constant 0 : i32
    return %c0_i32, %c0_i32_0 : i32, i32
  }
  func.func @transform_1(%arg0: i32) -> (i32, i32) {
    %c0_i32 = arith.constant 0 : i32
    %c0_i32_0 = arith.constant 0 : i32
    %c0_i32_1 = arith.constant 0 : i32
    return %c0_i32, %c0_i32_0 : i32, i32
  }
  func.func @transform_2(%arg0: i32) -> (i32, i32) {
    %c0_i32 = arith.constant 0 : i32
    %c0_i32_0 = arith.constant 0 : i32
    %c0_i32_1 = arith.constant 0 : i32
    return %c0_i32, %c0_i32_0 : i32, i32
  }
}

module attributes {stable_mosaic.version = 11 : i64} {
  func.func @kernel(%arg0: i32, %arg1: memref<128x64xf32, #tpu.memory_space<vmem>>, %arg2: memref<64x128xf32, #tpu.memory_space<vmem>>, %arg3: memref<1x128xf32, #tpu.memory_space<vmem>>, %arg4: memref<128x128xf32, #tpu.memory_space<vmem>>, %arg5: memref<1x128xf32, #tpu.memory_space<vmem>>, %arg6: memref<128x128xf32, #tpu.memory_space<vmem>>) attributes {dimension_semantics = [#tpu.dimension_semantics<parallel>], iteration_bounds = array<i64: 1>, scalar_prefetch = 0 : i64, scratch_operands = 0 : i64, tpu.core_type = #tpu.core_type<tc>, window_params = [{transform_indices = @transform_0, window_bounds = array<i64: 128, 64>}, {pipeline_mode = #tpu.pipeline_mode<synchronous>, transform_indices = @transform_1, window_bounds = array<i64: 64, 128>}, {pipeline_mode = #tpu.pipeline_mode<synchronous>, transform_indices = @transform_2, window_bounds = array<i64: 1, 128>}, {pipeline_mode = #tpu.pipeline_mode<synchronous>, transform_indices = @transform_3, window_bounds = array<i64: 128, 128>}, {pipeline_mode = #tpu.pipeline_mode<synchronous>, transform_indices = @transform_4, window_bounds = array<i64: 1, 128>}, {transform_indices = @transform_5, window_bounds = array<i64: 128, 128>}]} {
    %c0 = arith.constant 0 : index
    %c0_0 = arith.constant 0 : index
    %0 = vector.load %arg1[%c0, %c0_0] : memref<128x64xf32, #tpu.memory_space<vmem>>, vector<128x64xf32>
    %c0_1 = arith.constant 0 : index
    %c0_2 = arith.constant 0 : index
    %1 = vector.load %arg2[%c0_1, %c0_2] : memref<64x128xf32, #tpu.memory_space<vmem>>, vector<64x128xf32>
    %c0_3 = arith.constant 0 : index
    %c0_4 = arith.constant 0 : index
    %2 = vector.load %arg3[%c0_3, %c0_4] : memref<1x128xf32, #tpu.memory_space<vmem>>, vector<1x128xf32>
    %cst = arith.constant dense<0.000000e+00> : vector<128x128xf32>
    %3 = tpu.matmul %0, %1, %cst {dimension_numbers = #tpu.dot_dimension_numbers<[1], [0], [0], [1], [0, 0, 1, 1], [], []>} : vector<128x64xf32>, vector<64x128xf32>, vector<128x128xf32> -> vector<128x128xf32>
    %4 = vector.broadcast %2 : vector<1x128xf32> to vector<128x128xf32>
    %5 = arith.addf %3, %4 : vector<128x128xf32>
    %cst_5 = arith.constant 0.000000e+00 : f32
    %6 = vector.broadcast %cst_5 : f32 to vector<128x128xf32>
    %7 = arith.maximumf %5, %6 : vector<128x128xf32>
    %c0_6 = arith.constant 0 : index
    %c0_7 = arith.constant 0 : index
    %8 = vector.load %arg4[%c0_6, %c0_7] : memref<128x128xf32, #tpu.memory_space<vmem>>, vector<128x128xf32>
    %c0_8 = arith.constant 0 : index
    %c0_9 = arith.constant 0 : index
    %9 = vector.load %arg5[%c0_8, %c0_9] : memref<1x128xf32, #tpu.memory_space<vmem>>, vector<1x128xf32>
    %cst_10 = arith.constant dense<0.000000e+00> : vector<128x128xf32>
    %10 = tpu.matmul %7, %8, %cst_10 {dimension_numbers = #tpu.dot_dimension_numbers<[1], [0], [0], [1], [0, 0, 1, 1], [], []>} : vector<128x128xf32>, vector<128x128xf32>, vector<128x128xf32> -> vector<128x128xf32>
    %11 = vector.broadcast %9 : vector<1x128xf32> to vector<128x128xf32>
    %12 = arith.addf %10, %11 : vector<128x128xf32>
    %cst_11 = arith.constant 0.000000e+00 : f32
    %13 = vector.broadcast %cst_11 : f32 to vector<128x128xf32>
    %14 = arith.maximumf %12, %13 : vector<128x128xf32>
    %c0_12 = arith.constant 0 : index
    %c0_13 = arith.constant 0 : index
    %15 = vector.load %arg6[%c0_12, %c0_13] : memref<128x128xf32, #tpu.memory_space<vmem>>, vector<128x128xf32>
    tpu.vector_store %arg6[%c0_12, %c0_13], %14 {strides = array<i32>} : memref<128x128xf32, #tpu.memory_space<vmem>>, vector<128x128xf32>,
    return
  }
  func.func @transform_0(%arg0: i32) -> (i32, i32) {
    %c0_i32 = arith.constant 0 : i32
    %c0_i32_0 = arith.constant 0 : i32
    return %arg0, %c0_i32 : i32, i32
  }
  func.func @transform_1(%arg0: i32) -> (i32, i32) {
    %c0_i32 = arith.constant 0 : i32
    %c0_i32_0 = arith.constant 0 : i32
    %c0_i32_1 = arith.constant 0 : i32
    return %c0_i32, %c0_i32_0 : i32, i32
  }
  func.func @transform_2(%arg0: i32) -> (i32, i32) {
    %c0_i32 = arith.constant 0 : i32
    %c0_i32_0 = arith.constant 0 : i32
    %c0_i32_1 = arith.constant 0 : i32
    return %c0_i32, %c0_i32_0 : i32, i32
  }
  func.func @transform_3(%arg0: i32) -> (i32, i32) {
    %c0_i32 = arith.constant 0 : i32
    %c0_i32_0 = arith.constant 0 : i32
    %c0_i32_1 = arith.constant 0 : i32
    return %c0_i32, %c0_i32_0 : i32, i32
  }
  func.func @transform_4(%arg0: i32) -> (i32, i32) {
    %c0_i32 = arith.constant 0 : i32
    %c0_i32_0 = arith.constant 0 : i32
    %c0_i32_1 = arith.constant 0 : i32
    return %c0_i32, %c0_i32_0 : i32, i32
  }
  func.func @transform_5(%arg0: i32) -> (i32, i32) {
    %c0_i32 = arith.constant 0 : i32
    %c0_i32_0 = arith.constant 0 : i32
    return %arg0, %c0_i32 : i32, i32
  }
}

</mosaic_0001>

<llo_original>
// kernel: tpu_custom_call.1
$region0: #{tpu_custom_call.1}
  #allocation0 [shape = 'u32[]', space=smem, size = 0x4, offset = 0x4, fixed_abs, tag = 'smem constant byte address 0x4 - core index']
  #allocation1 [shape = 'u32[72,128]{1,0:T(1,128)}', space=vmem, size = 0x9000, scoped, tag = 'internal scratch']
  %s0 = inlined_call_operand.hbm [shape: f32[8,128], index: 0, kind: input, shape index: {}]
  %s1 = inlined_call_operand.hbm [shape: f32[8,128], index: 1, kind: input, shape index: {}]
  %s2 = inlined_call_operand.hbm [shape: f32[8,128], index: 2, kind: output, shape index: {}]
  %s3 = sld [smem:[#allocation0]]
  $region49: #{tpu_custom_call.1} parent=0
    _
  %s5 = ssub.s32 1, %s3
  %s6 = scalar_select 0, %s5, %s3
  $region1: #{tpu_custom_call.1} parent=0
    #allocation2 [shape = 'u8[4096]{0}', space=vmem, size = 0x1000, scoped, tag = 'input window, operand 0, single buffered']
    #allocation3 [shape = 's32[2]{0}', space=sflag, size = 0x8, scoped, tag = 'scoped memory for tpu_custom_call.1']
    #allocation4 [shape = 's32[2]{0}', space=sflag, size = 0x8, scoped, tag = 'scoped memory for tpu_custom_call.1']
    #allocation5 [shape = 'u8[4096]{0}', space=vmem, size = 0x1000, scoped, tag = 'input window, operand 1, single buffered']
    #allocation6 [shape = 's32[1]{0}', space=sflag, size = 0x4, scoped, tag = 'scoped memory for tpu_custom_call.1']
    #allocation7 [shape = 'u8[4096]{0}', space=vmem, size = 0x1000, scoped, tag = 'output window, operand 0, single buffered']
    %7 = vsyncpa [#allocation3], 0
    %8 = vsyncpa [#allocation6], 0
    %9 = vsyncpa [#allocation4], 0
    loop: start=0, step=1, limit=4
    $region2: #{tpu_custom_call.1} parent=1 // loop_pre_header
      _
    $region3: #{tpu_custom_call.1} parent=1 // loop_header
      %s11 = sphi 0, %s15
      %p12 = scmp.ge.s32.totalorder %s11, 4
      %s19 = sphi 0, %s19
      %s21 = sphi 0, %s19
      %s22 = sphi 0, %s21
      %s36 = sphi 0, %s22
      %s40 = sphi 0, %s40
      %s42 = sphi 0, %s40
      %s43 = sphi 0, %s42
      %s57 = sphi 0, %s43
      %s61 = sphi 0, %s61
      %s63 = sphi 0, %s61
      %s64 = sphi 0, %s63
      %s78 = sphi 0, %s64
    $region4: #{tpu_custom_call.1} parent=1 // loop_header_branch
      %14 = sbr.rel (%p12) target = $region8
    $region5: #{tpu_custom_call.1} parent=1 // loop_body
      %s16 = ssub.s32 %s11, 1
      %s17 = ssub.s32 %s11, 2
      %s18 = sadd.s32 %s11, 1
      %s20 = sadd.s32 %s19, 1
      %p23 = scmp.eq.s32.totalorder %s11, 1
      %p24 = scmp.ne.s32.totalorder %s19, %s21
      %p25 = scmp.eq.s32.totalorder %s11, 0
      %p26 = por %p24, %p25
      %p27 = scmp.ne.s32.totalorder %s19, %s21
      %p28 = scmp.eq.s32.totalorder %s16, 1
      %p29 = por %p27, %p28
      %p30 = scmp.ne.s32.totalorder %s21, %s22
      %p31 = scmp.eq.s32.totalorder %s16, 0
      %p32 = por %p30, %p31
      %p33 = scmp.ne.s32.totalorder %s21, %s22
      %p34 = scmp.eq.s32.totalorder %s17, 1
      %p35 = por %p33, %p34
      %p37 = scmp.ne.s32.totalorder %s22, %s36
      %p38 = scmp.eq.s32.totalorder %s17, 0
      %p39 = por %p37, %p38
      %s41 = sadd.s32 %s40, 1
      %p44 = scmp.eq.s32.totalorder %s11, 1
      %p45 = scmp.ne.s32.totalorder %s40, %s42
      %p46 = scmp.eq.s32.totalorder %s11, 0
      %p47 = por %p45, %p46
      %p48 = scmp.ne.s32.totalorder %s40, %s42
      %p49 = scmp.eq.s32.totalorder %s16, 1
      %p50 = por %p48, %p49
      %p51 = scmp.ne.s32.totalorder %s42, %s43
      %p52 = scmp.eq.s32.totalorder %s16, 0
      %p53 = por %p51, %p52
      %p54 = scmp.ne.s32.totalorder %s42, %s43
      %p55 = scmp.eq.s32.totalorder %s17, 1
      %p56 = por %p54, %p55
      %p58 = scmp.ne.s32.totalorder %s43, %s57
      %p59 = scmp.eq.s32.totalorder %s17, 0
      %p60 = por %p58, %p59
      %s62 = sadd.s32 %s61, 1
      %p65 = scmp.eq.s32.totalorder %s11, 1
      %p66 = scmp.ne.s32.totalorder %s61, %s63
      %p67 = scmp.eq.s32.totalorder %s11, 0
      %p68 = por %p66, %p67
      %p69 = scmp.ne.s32.totalorder %s61, %s63
      %p70 = scmp.eq.s32.totalorder %s16, 1
      %p71 = por %p69, %p70
      %p72 = scmp.ne.s32.totalorder %s63, %s64
      %p73 = scmp.eq.s32.totalorder %s16, 0
      %p74 = por %p72, %p73
      %p75 = scmp.ne.s32.totalorder %s63, %s64
      %p76 = scmp.eq.s32.totalorder %s17, 1
      %p77 = por %p75, %p76
      %p79 = scmp.ne.s32.totalorder %s64, %s78
      %p80 = scmp.eq.s32.totalorder %s17, 0
      %p81 = por %p79, %p80
      %p82 = scmp.le.s32.totalorder 1, %s11
      %p83 = scmp.lt.s32.totalorder %s11, 3
      %p84 = pnand %p82, %p83
      %p85 = pneg %p84
      // Predicated region
      $region9: #{tpu_custom_call.1} parent=5 // pred_check
        _
      $region10: #{tpu_custom_call.1} parent=5 // pred_check_branch
        %87 = sbr.rel (%p84) target = $region12
      $region11: #{tpu_custom_call.1} parent=5 // pred_region
        %s88 = ssub.s32 %s11, 1
        // Predicated region
        $region13: #{tpu_custom_call.1} parent=11 // pred_check
          %p89 = pneg %p32
        $region14: #{tpu_custom_call.1} parent=11 // pred_check_branch
          %91 = sbr.rel (%p89) target = $region16
        $region15: #{tpu_custom_call.1} parent=11 // pred_region
          %93 = vsyncadd [#allocation3], 0
          %s95 = sshll.u32 %s0, 4
          %s96 = int_to_ptr.hbm [resolvable:$true] %s95
          %s97 = sshll.u32 [#allocation2], 4
          %s98 = int_to_ptr.vmem [resolvable:$true] %s97
          %100 = dma.hbm_to_vmem [thread:$0]  %s96, 128, %s98, [#allocation3]
        $region16: #{tpu_custom_call.1} parent=11 // pred_fallthru
          _
        // Predicated region
        $region17: #{tpu_custom_call.1} parent=11 // pred_check
          %p101 = pneg %p53
        $region18: #{tpu_custom_call.1} parent=11 // pred_check_branch
          %103 = sbr.rel (%p101) target = $region20
        $region19: #{tpu_custom_call.1} parent=11 // pred_region
          %105 = vsyncadd [#allocation6], 0
          %s107 = sshll.u32 %s1, 4
          %s108 = int_to_ptr.hbm [resolvable:$true] %s107
          %s109 = sshll.u32 [#allocation5], 4
          %s110 = int_to_ptr.vmem [resolvable:$true] %s109
          %112 = dma.hbm_to_vmem [thread:$0]  %s108, 128, %s110, [#allocation6]
        $region20: #{tpu_custom_call.1} parent=11 // pred_fallthru
          _
      $region12: #{tpu_custom_call.1} parent=5 // pred_fallthru
        _
      %p113 = scmp.lt.s32.totalorder %s11, 2
      // Predicated region
      $region21: #{tpu_custom_call.1} parent=5 // pred_check
        %p114 = pneg %p113
      $region22: #{tpu_custom_call.1} parent=5 // pred_check_branch
        %116 = sbr.rel (%p114) target = $region24
      $region23: #{tpu_custom_call.1} parent=5 // pred_region
        _
      $region24: #{tpu_custom_call.1} parent=5 // pred_fallthru
        _
      %p117 = scmp.le.s32.totalorder 1, %s11
      %p118 = scmp.lt.s32.totalorder %s11, 3
      %p119 = pnand %p117, %p118
      %p120 = pneg %p119
      // Predicated region
      $region25: #{tpu_custom_call.1} parent=5 // pred_check
        _
      $region26: #{tpu_custom_call.1} parent=5 // pred_check_branch
        %122 = sbr.rel (%p119) target = $region28
      $region27: #{tpu_custom_call.1} parent=5 // pred_region
        %s123 = ssub.s32 %s11, 1
        // Predicated region
        $region29: #{tpu_custom_call.1} parent=27 // pred_check
          %p124 = pneg %p32
        $region30: #{tpu_custom_call.1} parent=27 // pred_check_branch
          %126 = sbr.rel (%p124) target = $region32
        $region31: #{tpu_custom_call.1} parent=27 // pred_region
          %128 = dma.done [#allocation3], 128
        $region32: #{tpu_custom_call.1} parent=27 // pred_fallthru
          _
        // Predicated region
        $region33: #{tpu_custom_call.1} parent=27 // pred_check
          %p129 = pneg %p53
        $region34: #{tpu_custom_call.1} parent=27 // pred_check_branch
          %131 = sbr.rel (%p129) target = $region36
        $region35: #{tpu_custom_call.1} parent=27 // pred_region
          %133 = dma.done [#allocation6], 128
        $region36: #{tpu_custom_call.1} parent=27 // pred_fallthru
          _
        %p134 = pneg %p32
        %p135 = pneg %p29
        %p136 = pneg %p53
        %p137 = pneg %p50
        %p138 = pneg %p74
        %p139 = pneg %p71
        %v140 = vld [vmem:[#allocation5] sm:$0xff]
        %v141 = vld [vmem:[#allocation2] sm:$0xff]
        %v142 = vadd.f32 %v140, %v141
        %143 = vst [vmem:[#allocation7] sm:$0xff] %v142
        // Predicated region
        $region37: #{tpu_custom_call.1} parent=27 // pred_check
          %p144 = pneg %p71
        $region38: #{tpu_custom_call.1} parent=27 // pred_check_branch
          %146 = sbr.rel (%p144) target = $region40
        $region39: #{tpu_custom_call.1} parent=27 // pred_region
          %148 = vsyncadd [#allocation4], 0
          %s150 = sshll.u32 [#allocation7], 4
          %s151 = int_to_ptr.vmem [resolvable:$true] %s150
          %s152 = sshll.u32 %s2, 4
          %s153 = int_to_ptr.hbm [resolvable:$true] %s152
          %155 = dma.vmem_to_hbm [thread:$0]  %s151, 128, %s153, [#allocation4]
        $region40: #{tpu_custom_call.1} parent=27 // pred_fallthru
          _
        // Predicated region
        $region41: #{tpu_custom_call.1} parent=27 // pred_check
          %p156 = pneg %p71
        $region42: #{tpu_custom_call.1} parent=27 // pred_check_branch
          %158 = sbr.rel (%p156) target = $region44
        $region43: #{tpu_custom_call.1} parent=27 // pred_region
          %160 = dma.done [#allocation4], 128
        $region44: #{tpu_custom_call.1} parent=27 // pred_fallthru
          _
      $region28: #{tpu_custom_call.1} parent=5 // pred_fallthru
        _
      %p161 = scmp.le.s32.totalorder 2, %s11
      // Predicated region
      $region45: #{tpu_custom_call.1} parent=5 // pred_check
        %p162 = pneg %p161
      $region46: #{tpu_custom_call.1} parent=5 // pred_check_branch
        %164 = sbr.rel (%p162) target = $region48
      $region47: #{tpu_custom_call.1} parent=5 // pred_region
        %s165 = ssub.s32 %s11, 2
      $region48: #{tpu_custom_call.1} parent=5 // pred_fallthru
        _
    $region6: #{tpu_custom_call.1} parent=1 // loop_footer
      %s15 = sadd.s32 1, %s11
    $region7: #{tpu_custom_call.1} parent=1 // loop_footer_branch
      %10 = sbr.rel target = $region3
    $region8: #{tpu_custom_call.1} parent=1 // loop_exit
      _
    %166 = vsyncpa [#allocation3], 1
    %s167 = scalar_lea.sflag [#allocation3], 1
    %168 = vsyncpa %s167, 1
    %169 = vsyncpa [#allocation6], 1
    %170 = vsyncpa [#allocation4], 1
    %s171 = scalar_lea.sflag [#allocation4], 1
    %172 = vsyncpa %s171, 1

// kernel: forward.1
$region0: #{forward.1}
  #allocation0 [shape = 'u32[]', space=smem, size = 0x4, offset = 0x4, fixed_abs, tag = 'smem constant byte address 0x4 - core index']
  #allocation1 [shape = 'u32[72,128]{1,0:T(1,128)}', space=vmem, size = 0x9000, scoped, tag = 'internal scratch']
  %s0 = inlined_call_operand.vmem [shape: f32[128,64], index: 0, kind: input, shape index: {}]
  %s1 = inlined_call_operand.vmem [shape: f32[64,128], index: 1, kind: input, shape index: {}]
  %s2 = inlined_call_operand.vmem [shape: f32[1,128], index: 2, kind: input, shape index: {}]
  %s3 = inlined_call_operand.vmem [shape: f32[128,128], index: 3, kind: input, shape index: {}]
  %s4 = inlined_call_operand.vmem [shape: f32[1,128], index: 4, kind: input, shape index: {}]
  %s5 = inlined_call_operand.vmem [shape: f32[128,128], index: 5, kind: output, shape index: {}]
  %s6 = sld [smem:[#allocation0]]
  $region30: #{forward.1} parent=0
    _
  %s8 = ssub.s32 1, %s6
  %s9 = scalar_select 0, %s8, %s6
  // Predicated region
  $region2: #{forward.1} parent=0 // pred_check
    _
  $region3: #{forward.1} parent=0 // pred_check_branch
    %11 = sbr.rel (0) target = $region5
  $region4: #{forward.1} parent=0 // pred_region
    _
  $region5: #{forward.1} parent=0 // pred_fallthru
    _
  // Predicated region
  $region6: #{forward.1} parent=0 // pred_check
    _
  $region7: #{forward.1} parent=0 // pred_check_branch
    %13 = sbr.rel (0) target = $region9
  $region8: #{forward.1} parent=0 // pred_region
    _
  $region9: #{forward.1} parent=0 // pred_fallthru
    _
  // Predicated region
  $region10: #{forward.1} parent=0 // pred_check
    _
  $region11: #{forward.1} parent=0 // pred_check_branch
    %15 = sbr.rel (0) target = $region13
  $region12: #{forward.1} parent=0 // pred_region
    _
  $region13: #{forward.1} parent=0 // pred_fallthru
    _
  // Predicated region
  $region14: #{forward.1} parent=0 // pred_check
    _
  $region15: #{forward.1} parent=0 // pred_check_branch
    %17 = sbr.rel (0) target = $region17
  $region16: #{forward.1} parent=0 // pred_region
    _
  $region17: #{forward.1} parent=0 // pred_fallthru
    _
  // Predicated region
  $region18: #{forward.1} parent=0 // pred_check
    _
  $region19: #{forward.1} parent=0 // pred_check_branch
    %19 = sbr.rel (0) target = $region21
  $region20: #{forward.1} parent=0 // pred_region
    _
  $region21: #{forward.1} parent=0 // pred_fallthru
    _
  %v20 = vld [vmem:[%s0] sm:$0xff]
  %v21 = vld [vmem:[%s0 + $0x8] sm:$0xff]
  %v22 = vld [vmem:[%s0 + $0x10] sm:$0xff]
  %v23 = vld [vmem:[%s0 + $0x18] sm:$0xff]
  %v24 = vld [vmem:[%s0 + $0x20] sm:$0xff]
  %v25 = vld [vmem:[%s0 + $0x28] sm:$0xff]
  %v26 = vld [vmem:[%s0 + $0x30] sm:$0xff]
  %v27 = vld [vmem:[%s0 + $0x38] sm:$0xff]
  %v28 = vld [vmem:[%s0 + $0x40] sm:$0xff]
  %v29 = vld [vmem:[%s0 + $0x48] sm:$0xff]
  %v30 = vld [vmem:[%s0 + $0x50] sm:$0xff]
  %v31 = vld [vmem:[%s0 + $0x58] sm:$0xff]
  %v32 = vld [vmem:[%s0 + $0x60] sm:$0xff]
  %v33 = vld [vmem:[%s0 + $0x68] sm:$0xff]
  %v34 = vld [vmem:[%s0 + $0x70] sm:$0xff]
  %v35 = vld [vmem:[%s0 + $0x78] sm:$0xff]
  %v36 = vld [vmem:[%s1] sm:$0xff]
  %v37 = vld [vmem:[%s1 + $0x8] sm:$0xff]
  %v38 = vld [vmem:[%s1 + $0x10] sm:$0xff]
  %v39 = vld [vmem:[%s1 + $0x18] sm:$0xff]
  %v40 = vld [vmem:[%s1 + $0x20] sm:$0xff]
  %v41 = vld [vmem:[%s1 + $0x28] sm:$0xff]
  %v42 = vld [vmem:[%s1 + $0x30] sm:$0xff]
  %v43 = vld [vmem:[%s1 + $0x38] sm:$0xff]
  %v44 = vld [vmem:[%s2] sm:$0x1]
  %v46 = vperm.slane %v44, 0
  %vm48 = vcmask 523264
  %v50 = vsel %vm48, %v20, 0
  %v53 = vsel %vm48, %v21, 0
  %v56 = vsel %vm48, %v22, 0
  %v59 = vsel %vm48, %v23, 0
  %v62 = vsel %vm48, %v24, 0
  %v65 = vsel %vm48, %v25, 0
  %v68 = vsel %vm48, %v26, 0
  %v71 = vsel %vm48, %v27, 0
  %v74 = vsel %vm48, %v28, 0
  %v77 = vsel %vm48, %v29, 0
  %v80 = vsel %vm48, %v30, 0
  %v83 = vsel %vm48, %v31, 0
  %v86 = vsel %vm48, %v32, 0
  %v89 = vsel %vm48, %v33, 0
  %v92 = vsel %vm48, %v34, 0
  %v95 = vsel %vm48, %v35, 0
  %97 = vmatpush.msra.mxu0 0.0
  %98 = vmatpush.msra.mxu0 0.0
  %99 = vmatpush.msra.mxu0 0.0
  %100 = vmatpush.msra.mxu0 0.0
  %101 = vmatpush.msra.mxu0 0.0
  %102 = vmatpush.msra.mxu0 0.0
  %103 = vmatpush.msra.mxu0 0.0
  %104 = vmatpush.msra.mxu0 0.0
  %105 = vmatpush.msra.mxu0 %v43
  %106 = vmatpush.msra.mxu0 %v42
  %107 = vmatpush.msra.mxu0 %v41
  %108 = vmatpush.msra.mxu0 %v40
  %109 = vmatpush.msra.mxu0 %v39
  %110 = vmatpush.msra.mxu0 %v38
  %111 = vmatpush.msra.mxu0 %v37
  %112 = vmatpush.msra.mxu0 %v36
  %113 = vmatmul.f32.gmra.mxu0 %v50
  %v114 = vpop.f32.mrf.mxu0
  %v115 = vadd.f32 %v46, %v114
  %116 = vmatmul.f32.gmra.mxu0 %v53
  %v117 = vpop.f32.mrf.mxu0
  %v118 = vadd.f32 %v46, %v117
  %119 = vmatmul.f32.gmra.mxu0 %v56
  %v120 = vpop.f32.mrf.mxu0
  %v121 = vadd.f32 %v46, %v120
  %122 = vmatmul.f32.gmra.mxu0 %v59
  %v123 = vpop.f32.mrf.mxu0
  %v124 = vadd.f32 %v46, %v123
  %125 = vmatmul.f32.gmra.mxu0 %v62
  %v126 = vpop.f32.mrf.mxu0
  %v127 = vadd.f32 %v46, %v126
  %128 = vmatmul.f32.gmra.mxu0 %v65
  %v129 = vpop.f32.mrf.mxu0
  %v130 = vadd.f32 %v46, %v129
  %131 = vmatmul.f32.gmra.mxu0 %v68
  %v132 = vpop.f32.mrf.mxu0
  %v133 = vadd.f32 %v46, %v132
  %134 = vmatmul.f32.gmra.mxu0 %v71
  %v135 = vpop.f32.mrf.mxu0
  %v136 = vadd.f32 %v46, %v135
  %137 = vmatmul.f32.gmra.mxu0 %v74
  %v138 = vpop.f32.mrf.mxu0
  %v139 = vadd.f32 %v46, %v138
  %140 = vmatmul.f32.gmra.mxu0 %v77
  %v141 = vpop.f32.mrf.mxu0
  %v142 = vadd.f32 %v46, %v141
  %143 = vmatmul.f32.gmra.mxu0 %v80
  %v144 = vpop.f32.mrf.mxu0
  %v145 = vadd.f32 %v46, %v144
  %146 = vmatmul.f32.gmra.mxu0 %v83
  %v147 = vpop.f32.mrf.mxu0
  %v148 = vadd.f32 %v46, %v147
  %149 = vmatmul.f32.gmra.mxu0 %v86
  %v150 = vpop.f32.mrf.mxu0
  %v151 = vadd.f32 %v46, %v150
  %152 = vmatmul.f32.gmra.mxu0 %v89
  %v153 = vpop.f32.mrf.mxu0
  %v154 = vadd.f32 %v46, %v153
  %155 = vmatmul.f32.gmra.mxu0 %v92
  %v156 = vpop.f32.mrf.mxu0
  %v157 = vadd.f32 %v46, %v156
  %158 = vmatmul.f32.gmra.mxu0 %v95
  %v159 = vpop.f32.mrf.mxu0
  %v160 = vadd.f32 %v46, %v159
  %161 = vdwg.mxu0
  %v162 = vmax.f32 %v115, 0.0
  %v163 = vmax.f32 %v118, 0.0
  %v164 = vmax.f32 %v121, 0.0
  %v165 = vmax.f32 %v124, 0.0
  %v166 = vmax.f32 %v127, 0.0
  %v167 = vmax.f32 %v130, 0.0
  %v168 = vmax.f32 %v133, 0.0
  %v169 = vmax.f32 %v136, 0.0
  %v170 = vmax.f32 %v139, 0.0
  %v171 = vmax.f32 %v142, 0.0
  %v172 = vmax.f32 %v145, 0.0
  %v173 = vmax.f32 %v148, 0.0
  %v174 = vmax.f32 %v151, 0.0
  %v175 = vmax.f32 %v154, 0.0
  %v176 = vmax.f32 %v157, 0.0
  %v177 = vmax.f32 %v160, 0.0
  %v178 = vld [vmem:[%s3] sm:$0xff]
  %v179 = vld [vmem:[%s3 + $0x8] sm:$0xff]
  %v180 = vld [vmem:[%s3 + $0x10] sm:$0xff]
  %v181 = vld [vmem:[%s3 + $0x18] sm:$0xff]
  %v182 = vld [vmem:[%s3 + $0x20] sm:$0xff]
  %v183 = vld [vmem:[%s3 + $0x28] sm:$0xff]
  %v184 = vld [vmem:[%s3 + $0x30] sm:$0xff]
  %v185 = vld [vmem:[%s3 + $0x38] sm:$0xff]
  %v186 = vld [vmem:[%s3 + $0x40] sm:$0xff]
  %v187 = vld [vmem:[%s3 + $0x48] sm:$0xff]
  %v188 = vld [vmem:[%s3 + $0x50] sm:$0xff]
  %v189 = vld [vmem:[%s3 + $0x58] sm:$0xff]
  %v190 = vld [vmem:[%s3 + $0x60] sm:$0xff]
  %v191 = vld [vmem:[%s3 + $0x68] sm:$0xff]
  %v192 = vld [vmem:[%s3 + $0x70] sm:$0xff]
  %v193 = vld [vmem:[%s3 + $0x78] sm:$0xff]
  %v194 = vld [vmem:[%s4] sm:$0x1]
  %v196 = vperm.slane %v194, 0
  %198 = vmatpush.msra.mxu0 %v193
  %199 = vmatpush.msra.mxu0 %v192
  %200 = vmatpush.msra.mxu0 %v191
  %201 = vmatpush.msra.mxu0 %v190
  %202 = vmatpush.msra.mxu0 %v189
  %203 = vmatpush.msra.mxu0 %v188
  %204 = vmatpush.msra.mxu0 %v187
  %205 = vmatpush.msra.mxu0 %v186
  %206 = vmatpush.msra.mxu0 %v185
  %207 = vmatpush.msra.mxu0 %v184
  %208 = vmatpush.msra.mxu0 %v183
  %209 = vmatpush.msra.mxu0 %v182
  %210 = vmatpush.msra.mxu0 %v181
  %211 = vmatpush.msra.mxu0 %v180
  %212 = vmatpush.msra.mxu0 %v179
  %213 = vmatpush.msra.mxu0 %v178
  %214 = vmatmul.f32.gmra.mxu0 %v162
  %v215 = vpop.f32.mrf.mxu0
  %v216 = vadd.f32 %v196, %v215
  %217 = vmatmul.f32.gmra.mxu0 %v163
  %v218 = vpop.f32.mrf.mxu0
  %v219 = vadd.f32 %v196, %v218
  %220 = vmatmul.f32.gmra.mxu0 %v164
  %v221 = vpop.f32.mrf.mxu0
  %v222 = vadd.f32 %v196, %v221
  %223 = vmatmul.f32.gmra.mxu0 %v165
  %v224 = vpop.f32.mrf.mxu0
  %v225 = vadd.f32 %v196, %v224
  %226 = vmatmul.f32.gmra.mxu0 %v166
  %v227 = vpop.f32.mrf.mxu0
  %v228 = vadd.f32 %v196, %v227
  %229 = vmatmul.f32.gmra.mxu0 %v167
  %v230 = vpop.f32.mrf.mxu0
  %v231 = vadd.f32 %v196, %v230
  %232 = vmatmul.f32.gmra.mxu0 %v168
  %v233 = vpop.f32.mrf.mxu0
  %v234 = vadd.f32 %v196, %v233
  %235 = vmatmul.f32.gmra.mxu0 %v169
  %v236 = vpop.f32.mrf.mxu0
  %v237 = vadd.f32 %v196, %v236
  %238 = vmatmul.f32.gmra.mxu0 %v170
  %v239 = vpop.f32.mrf.mxu0
  %v240 = vadd.f32 %v196, %v239
  %241 = vmatmul.f32.gmra.mxu0 %v171
  %v242 = vpop.f32.mrf.mxu0
  %v243 = vadd.f32 %v196, %v242
  %244 = vmatmul.f32.gmra.mxu0 %v172
  %v245 = vpop.f32.mrf.mxu0
  %v246 = vadd.f32 %v196, %v245
  %247 = vmatmul.f32.gmra.mxu0 %v173
  %v248 = vpop.f32.mrf.mxu0
  %v249 = vadd.f32 %v196, %v248
  %250 = vmatmul.f32.gmra.mxu0 %v174
  %v251 = vpop.f32.mrf.mxu0
  %v252 = vadd.f32 %v196, %v251
  %253 = vmatmul.f32.gmra.mxu0 %v175
  %v254 = vpop.f32.mrf.mxu0
  %v255 = vadd.f32 %v196, %v254
  %256 = vmatmul.f32.gmra.mxu0 %v176
  %v257 = vpop.f32.mrf.mxu0
  %v258 = vadd.f32 %v196, %v257
  %259 = vmatmul.f32.gmra.mxu0 %v177
  %v260 = vpop.f32.mrf.mxu0
  %v261 = vadd.f32 %v196, %v260
  %262 = vdwg.mxu0
  %v263 = vmax.f32 %v216, 0.0
  %v264 = vmax.f32 %v219, 0.0
  %v265 = vmax.f32 %v222, 0.0
  %v266 = vmax.f32 %v225, 0.0
  %v267 = vmax.f32 %v228, 0.0
  %v268 = vmax.f32 %v231, 0.0
  %v269 = vmax.f32 %v234, 0.0
  %v270 = vmax.f32 %v237, 0.0
  %v271 = vmax.f32 %v240, 0.0
  %v272 = vmax.f32 %v243, 0.0
  %v273 = vmax.f32 %v246, 0.0
  %v274 = vmax.f32 %v249, 0.0
  %v275 = vmax.f32 %v252, 0.0
  %v276 = vmax.f32 %v255, 0.0
  %v277 = vmax.f32 %v258, 0.0
  %v278 = vmax.f32 %v261, 0.0
  %279 = vst [vmem:[%s5] sm:$0xff] %v263
  %280 = vst [vmem:[%s5 + $0x8] sm:$0xff] %v264
  %281 = vst [vmem:[%s5 + $0x10] sm:$0xff] %v265
  %282 = vst [vmem:[%s5 + $0x18] sm:$0xff] %v266
  %283 = vst [vmem:[%s5 + $0x20] sm:$0xff] %v267
  %284 = vst [vmem:[%s5 + $0x28] sm:$0xff] %v268
  %285 = vst [vmem:[%s5 + $0x30] sm:$0xff] %v269
  %286 = vst [vmem:[%s5 + $0x38] sm:$0xff] %v270
  %287 = vst [vmem:[%s5 + $0x40] sm:$0xff] %v271
  %288 = vst [vmem:[%s5 + $0x48] sm:$0xff] %v272
  %289 = vst [vmem:[%s5 + $0x50] sm:$0xff] %v273
  %290 = vst [vmem:[%s5 + $0x58] sm:$0xff] %v274
  %291 = vst [vmem:[%s5 + $0x60] sm:$0xff] %v275
  %292 = vst [vmem:[%s5 + $0x68] sm:$0xff] %v276
  %293 = vst [vmem:[%s5 + $0x70] sm:$0xff] %v277
  %294 = vst [vmem:[%s5 + $0x78] sm:$0xff] %v278
  // Predicated region
  $region22: #{forward.1} parent=0 // pred_check
    _
  $region23: #{forward.1} parent=0 // pred_check_branch
    %296 = sbr.rel (0) target = $region25
  $region24: #{forward.1} parent=0 // pred_region
    _
  $region25: #{forward.1} parent=0 // pred_fallthru
    _
  // Predicated region
  $region26: #{forward.1} parent=0 // pred_check
    _
  $region27: #{forward.1} parent=0 // pred_check_branch
    %298 = sbr.rel (0) target = $region29
  $region28: #{forward.1} parent=0 // pred_region
    _
  $region29: #{forward.1} parent=0 // pred_fallthru
    _

</llo_original>
